<compile_context>
chip_gen: v7x
topology: tpu7x:2x2x1
jax: 0.10.0
libtpu: 0.0.40
codegen_flags: <defaults>
</compile_context>

<pallas_src>
import functools
import math

import jax
import jax.numpy as jnp
from jax import lax
from jax.experimental import pallas as pl
from jax.experimental.pallas import tpu as pltpu


_NEG_INF = -1e30  # large negative instead of -inf: avoids inf-inf NaNs on masked tiles
_VMEM_BUDGET = 24 * 1024 * 1024  # target kernel footprint (fits v5e/v6e/v7x scoped limits)


def _flash_attn_kernel(q_ref, k_ref, v_ref, o_ref, q_sc, m_sc, l_sc, acc_sc, *,
                       scale, hb, E, D, kv_len, block_k, need_kv_mask, mxu_dtype):
    """One (batch, head-group, L-tile) flash pass over one S-tile.

    Block views (batch dim indexed away with [0]):
      q_ref: (1, tq, hb*E)  k_ref: (1, tk, hb*E)  v_ref: (1, tk, hb*D)  o_ref: (1, tq, hb*D)
    Scratch (persistent across the S grid axis):
      q_sc: (hb, tq, E) mxu dtype   -- scaled, head-major Q
      m_sc, l_sc: (hb, tq, 1) f32   -- online-softmax running max / sum
      acc_sc: (hb, tq, D) f32       -- output accumulator
    """
    sk = pl.program_id(3)

    @pl.when(sk == 0)
    def _init():
        m_sc[...] = jnp.full(m_sc.shape, _NEG_INF, dtype=m_sc.dtype)
        l_sc[...] = jnp.zeros_like(l_sc)
        acc_sc[...] = jnp.zeros_like(acc_sc)
        # Hoist the 1/sqrt(E) scaling (and the MXU-dtype cast) out of the S
        # loop: the Q tile is identical for every sk step.
        q = q_ref[0]                                        # (tq, hb*E)
        for h in range(hb):
            q_h = q[:, h * E:(h + 1) * E] * scale
            q_sc[h] = q_h.astype(q_sc.dtype)

    k = k_ref[0]                                            # (tk, hb*E)
    v = v_ref[0]                                            # (tk, hb*D)

    if need_kv_mask:
        col = sk * block_k + lax.broadcasted_iota(jnp.int32, (1, block_k), 1)
        kv_valid = col < kv_len                             # (1, tk)

    for h in range(hb):
        q_h = q_sc[h]                                       # (tq, E) mxu dtype
        k_h = k[:, h * E:(h + 1) * E].astype(mxu_dtype)     # (tk, E)

        # scores[q, k] = sum_e q[q, e] * k[k, e]   (MXU, f32 accumulation)
        s = lax.dot_general(q_h, k_h, (((1,), (1,)), ((), ())),
                            preferred_element_type=jnp.float32)      # (tq, tk)
        if need_kv_mask:
            s = jnp.where(kv_valid, s, _NEG_INF)

        # Online (flash) softmax update for this head.
        m_prev = m_sc[h]                                    # (tq, 1)
        m_new = jnp.maximum(m_prev, jnp.max(s, axis=-1, keepdims=True))
        alpha = jnp.exp(m_prev - m_new)
        p = jnp.exp(s - m_new)                              # (tq, tk) f32
        # TODO(synk): if the EUP is the binding unit on v6e/v7x (small E/D),
        # compute p via a bf16 exp to roughly double exp throughput.

        l_sc[h] = alpha * l_sc[h] + jnp.sum(p, axis=-1, keepdims=True)

        v_h = v[:, h * D:(h + 1) * D].astype(mxu_dtype)     # (tk, D)
        acc_sc[h] = alpha * acc_sc[h] + lax.dot_general(
            p.astype(mxu_dtype), v_h, (((1,), (0,)), ((), ())),
            preferred_element_type=jnp.float32)             # (tq, D)
        m_sc[h] = m_new

    @pl.when(sk == pl.num_programs(3) - 1)
    def _finalize():
        for h in range(hb):
            inv_l = pl.reciprocal(l_sc[h], approx=True)     # EUP slot
            o_ref[0, :, h * D:(h + 1) * D] = (acc_sc[h] * inv_l).astype(o_ref.dtype)


def _round_up(x, m):
    return ((x + m - 1) // m) * m


def _pick_seq_tile(n, cap):
    """Tile size that is a multiple of 8, close to `cap`, minimizing padding of n."""
    cap = max(8, (cap // 8) * 8)
    if n <= cap:
        return _round_up(n, 8)
    best_t, best_pad = cap, _round_up(n, cap) - n
    t = cap - 8
    while t > cap // 2 and best_pad > 0:
        pad = _round_up(n, t) - n
        if pad < best_pad:
            best_t, best_pad = t, pad
        t -= 8
    return best_t


def _pick_head_block(H, E, D, target):
    """Heads per block: hb*E and hb*D must be 128-lane aligned, or hb == H (full dim)."""
    divs = [d for d in range(1, H + 1) if H % d == 0]
    good = [d for d in divs if (d * E) % 128 == 0 and (d * D) % 128 == 0]
    if not good:
        return H
    small = [d for d in good if d <= target]
    return max(small) if small else min(good)


def _vmem_bytes(tq, tk, hb, E, D, in_bytes):
    io = 2 * (tq * hb * E + tk * hb * E + tk * hb * D + tq * hb * D) * in_bytes
    scratch = hb * tq * E * 2 + hb * tq * D * 4 + 2 * hb * tq * 128 * 4
    transient = 3 * tq * tk * 4          # s / p / temps (per-head, serialized)
    return io + scratch + transient


def self_attention(queries, keys, values, *, block_q=512, block_k=512,
                   block_h=4, mxu_bf16=True):
    """queries: (B,L,H,E), keys: (B,S,H,E), values: (B,S,H,D) -> (B,L,H,D)."""
    B, L, H, E = queries.shape
    _, S, _, D = values.shape
    out_dtype = queries.dtype
    scale = 1.0 / math.sqrt(E)

    hb = _pick_head_block(H, E, D, target=block_h)
    in_bytes = queries.dtype.itemsize
    tq = _pick_seq_tile(L, block_q)
    tk = _pick_seq_tile(S, block_k)
    # Clamp tiles so the kernel stays inside the per-generation VMEM budget.
    while _vmem_bytes(tq, tk, hb, E, D, in_bytes) > _VMEM_BUDGET and (tq > 128 or tk > 128):
        if tk >= tq and tk > 128:
            tk = max(128, tk // 2)
        else:
            tq = max(128, tq // 2)

    Lp = _round_up(L, tq)
    Sp = _round_up(S, tk)
    q, k, v = queries, keys, values
    if Lp != L:
        q = jnp.pad(q, ((0, 0), (0, Lp - L), (0, 0), (0, 0)))
    if Sp != S:
        k = jnp.pad(k, ((0, 0), (0, Sp - S), (0, 0), (0, 0)))
        v = jnp.pad(v, ((0, 0), (0, Sp - S), (0, 0), (0, 0)))

    # Fuse (H, E) -> H*E into the lane dim: a pure reshape of contiguous
    # trailing dims (no HBM transpose pass, unlike a (B,L,H,E)->(B,H,L,E) swap).
    q2 = q.reshape(B, Lp, H * E)
    k2 = k.reshape(B, Sp, H * E)
    v2 = v.reshape(B, Sp, H * D)

    mxu_dtype = jnp.bfloat16 if (mxu_bf16 and out_dtype == jnp.float32) else out_dtype
    need_kv_mask = Sp != S

    kernel = functools.partial(
        _flash_attn_kernel, scale=scale, hb=hb, E=E, D=D, kv_len=S,
        block_k=tk, need_kv_mask=need_kv_mask, mxu_dtype=mxu_dtype)

    out = pl.pallas_call(
        kernel,
        out_shape=jax.ShapeDtypeStruct((B, Lp, H * D), out_dtype),
        grid_spec=pltpu.PrefetchScalarGridSpec(
            num_scalar_prefetch=0,
            grid=(B, H // hb, Lp // tq, Sp // tk),
            in_specs=[
                pl.BlockSpec((1, tq, hb * E), lambda b, hg, lq, sk: (b, lq, hg)),
                pl.BlockSpec((1, tk, hb * E), lambda b, hg, lq, sk: (b, sk, hg)),
                pl.BlockSpec((1, tk, hb * D), lambda b, hg, lq, sk: (b, sk, hg)),
            ],
            out_specs=pl.BlockSpec((1, tq, hb * D), lambda b, hg, lq, sk: (b, lq, hg)),
            scratch_shapes=[
                pltpu.VMEM((hb, tq, E), mxu_dtype),     # scaled head-major Q
                pltpu.VMEM((hb, tq, 1), jnp.float32),   # running max m
                pltpu.VMEM((hb, tq, 1), jnp.float32),   # running sum l
                pltpu.VMEM((hb, tq, D), jnp.float32),   # output accumulator
            ],
        ),
        compiler_params=pltpu.CompilerParams(
            dimension_semantics=("parallel", "parallel", "parallel", "arbitrary"),
            vmem_limit_bytes=32 * 1024 * 1024,
        ),
        # TODO(synk): on v5e, pipeline_mode=pl.Buffered(3) on the K/V in_specs can
        # hide exposed DMA latency; left at default depth to conserve v7x VMEM.
    )(q2, k2, v2)

    out = out.reshape(B, Lp, H, D)
    if Lp != L:
        out = out[:, :L]
    return out


def _reference(queries, keys, values):
    E = queries.shape[-1]
    scale = 1.0 / math.sqrt(E)
    scores = jnp.einsum('blhe,bshe->bhls', queries, keys) * scale
    attn = jax.nn.softmax(scores, axis=-1)
    return jnp.einsum('bhls,bshd->blhd', attn, values)


if __name__ == "__main__":
    # Test 1: toy shape matching the module's conventions (single grid step).
    kq, kk, kv = jax.random.split(jax.random.PRNGKey(0), 3)
    B, L, S, H, E, D = 2, 8, 8, 2, 32, 32
    queries = jax.random.normal(kq, (B, L, H, E), dtype=jnp.float32)
    keys = jax.random.normal(kk, (B, S, H, E), dtype=jnp.float32)
    values = jax.random.normal(kv, (B, S, H, D), dtype=jnp.float32)

    out = self_attention(queries, keys, values)
    jax.block_until_ready(out)
    ref = _reference(queries, keys, values)
    assert out.shape == (B, L, H, D)
    assert jnp.allclose(out, ref, atol=2e-2, rtol=2e-2), "mismatch vs reference (test 1)"

    # Test 2: multiple L/S tiles -> exercises the online-softmax recurrence.
    kq2, kk2, kv2 = jax.random.split(jax.random.PRNGKey(1), 3)
    B2, L2, S2, H2, E2, D2 = 1, 64, 128, 2, 32, 32
    q2 = jax.random.normal(kq2, (B2, L2, H2, E2), dtype=jnp.float32)
    k2 = jax.random.normal(kk2, (B2, S2, H2, E2), dtype=jnp.float32)
    v2 = jax.random.normal(kv2, (B2, S2, H2, D2), dtype=jnp.float32)

    out2 = self_attention(q2, k2, v2, block_q=32, block_k=32)
    jax.block_until_ready(out2)
    ref2 = _reference(q2, k2, v2)
    assert out2.shape == (B2, L2, H2, D2)
    assert jnp.allclose(out2, ref2, atol=2e-2, rtol=2e-2), "mismatch vs reference (test 2)"

    # Test 3: ragged L/S -> exercises zero-padding plus key masking.
    kq3, kk3, kv3 = jax.random.split(jax.random.PRNGKey(2), 3)
    B3, L3, S3, H3, E3, D3 = 1, 12, 40, 2, 32, 32
    q3 = jax.random.normal(kq3, (B3, L3, H3, E3), dtype=jnp.float32)
    k3 = jax.random.normal(kk3, (B3, S3, H3, E3), dtype=jnp.float32)
    v3 = jax.random.normal(kv3, (B3, S3, H3, D3), dtype=jnp.float32)

    out3 = self_attention(q3, k3, v3, block_q=8, block_k=32)
    jax.block_until_ready(out3)
    ref3 = _reference(q3, k3, v3)
    assert out3.shape == (B3, L3, H3, D3)
    assert jnp.allclose(out3, ref3, atol=2e-2, rtol=2e-2), "mismatch vs reference (test 3)"

    print("KERNEL_OK")
</pallas_src>

<mosaic_0001>
module attributes {stable_mosaic.version = 11 : i64} {
  func.func @_flash_attn_kernel(%arg0: i32, %arg1: i32, %arg2: i32, %arg3: i32, %arg4: memref<1x8x64xf32, #tpu.memory_space<vmem>>, %arg5: memref<1x8x64xf32, #tpu.memory_space<vmem>>, %arg6: memref<1x8x64xf32, #tpu.memory_space<vmem>>, %arg7: memref<1x8x64xf32, #tpu.memory_space<vmem>>, %arg8: memref<2x8x32xbf16, #tpu.memory_space<vmem>>, %arg9: memref<2x8x1xf32, #tpu.memory_space<vmem>>, %arg10: memref<2x8x1xf32, #tpu.memory_space<vmem>>, %arg11: memref<2x8x32xf32, #tpu.memory_space<vmem>>) attributes {dimension_semantics = [#tpu.dimension_semantics<parallel>, #tpu.dimension_semantics<parallel>, #tpu.dimension_semantics<parallel>, #tpu.dimension_semantics<arbitrary>], iteration_bounds = array<i64: 2, 1, 1, 1>, scalar_prefetch = 0 : i64, scratch_operands = 4 : i64, tpu.core_type = #tpu.core_type<tc>, window_params = [{transform_indices = @transform_0, window_bounds = array<i64: 1, 8, 64>}, {transform_indices = @transform_1, window_bounds = array<i64: 1, 8, 64>}, {transform_indices = @transform_2, window_bounds = array<i64: 1, 8, 64>}, {transform_indices = @transform_3, window_bounds = array<i64: 1, 8, 64>}]} {
    %c0_i32 = arith.constant 0 : i32
    %0 = arith.cmpi eq, %arg3, %c0_i32 : i32
    %1 = arith.extui %0 : i1 to i32
    %c0_i32_0 = arith.constant 0 : i32
    %2 = arith.cmpi ne, %1, %c0_i32_0 : i32
    scf.if %2 {
      %cst_56 = arith.constant -1.000000e+30 : f32
      %88 = vector.broadcast %cst_56 : f32 to vector<2x8x1xf32>
      %c0_57 = arith.constant 0 : index
      %c0_58 = arith.constant 0 : index
      %c0_59 = arith.constant 0 : index
      %89 = vector.load %arg9[%c0_57, %c0_58, %c0_59] : memref<2x8x1xf32, #tpu.memory_space<vmem>>, vector<2x8x1xf32>
      tpu.vector_store %arg9[%c0_57, %c0_58, %c0_59], %88 {strides = array<i32>} : memref<2x8x1xf32, #tpu.memory_space<vmem>>, vector<2x8x1xf32>,
      %cst_60 = arith.constant 0.000000e+00 : f32
      %90 = vector.broadcast %cst_60 : f32 to vector<2x8x1xf32>
      %c0_61 = arith.constant 0 : index
      %c0_62 = arith.constant 0 : index
      %c0_63 = arith.constant 0 : index
      %91 = vector.load %arg10[%c0_61, %c0_62, %c0_63] : memref<2x8x1xf32, #tpu.memory_space<vmem>>, vector<2x8x1xf32>
      tpu.vector_store %arg10[%c0_61, %c0_62, %c0_63], %90 {strides = array<i32>} : memref<2x8x1xf32, #tpu.memory_space<vmem>>, vector<2x8x1xf32>,
      %cst_64 = arith.constant 0.000000e+00 : f32
      %92 = vector.broadcast %cst_64 : f32 to vector<2x8x32xf32>
      %c0_65 = arith.constant 0 : index
      %c0_66 = arith.constant 0 : index
      %c0_67 = arith.constant 0 : index
      %93 = vector.load %arg11[%c0_65, %c0_66, %c0_67] : memref<2x8x32xf32, #tpu.memory_space<vmem>>, vector<2x8x32xf32>
      tpu.vector_store %arg11[%c0_65, %c0_66, %c0_67], %92 {strides = array<i32>} : memref<2x8x32xf32, #tpu.memory_space<vmem>>, vector<2x8x32xf32>,
      %c0_68 = arith.constant 0 : index
      %c0_69 = arith.constant 0 : index
      %c0_70 = arith.constant 0 : index
      %94 = vector.load %arg4[%c0_68, %c0_69, %c0_70] : memref<1x8x64xf32, #tpu.memory_space<vmem>>, vector<1x8x64xf32>
      %95 = vector.shape_cast %94 : vector<1x8x64xf32> to vector<8x64xf32>
      %96 = vector.extract_strided_slice %95 {offsets = [0, 0], sizes = [8, 32], strides = [1, 1]} : vector<8x64xf32> to vector<8x32xf32>
      %cst_71 = arith.constant 0.176776692 : f32
      %97 = vector.broadcast %cst_71 : f32 to vector<8x32xf32>
      %98 = arith.mulf %96, %97 : vector<8x32xf32>
      %99 = arith.truncf %98 : vector<8x32xf32> to vector<8x32xbf16>
      %c0_72 = arith.constant 0 : index
      %c0_73 = arith.constant 0 : index
      %c0_74 = arith.constant 0 : index
      %100 = vector.load %arg8[%c0_72, %c0_73, %c0_74] : memref<2x8x32xbf16, #tpu.memory_space<vmem>>, vector<1x8x32xbf16>
      %101 = vector.shape_cast %100 : vector<1x8x32xbf16> to vector<8x32xbf16>
      %102 = vector.shape_cast %99 : vector<8x32xbf16> to vector<1x8x32xbf16>
      tpu.vector_store %arg8[%c0_72, %c0_73, %c0_74], %102 {strides = array<i32>} : memref<2x8x32xbf16, #tpu.memory_space<vmem>>, vector<1x8x32xbf16>,
      %103 = vector.extract_strided_slice %95 {offsets = [0, 32], sizes = [8, 32], strides = [1, 1]} : vector<8x64xf32> to vector<8x32xf32>
      %cst_75 = arith.constant 0.176776692 : f32
      %104 = vector.broadcast %cst_75 : f32 to vector<8x32xf32>
      %105 = arith.mulf %103, %104 : vector<8x32xf32>
      %106 = arith.truncf %105 : vector<8x32xf32> to vector<8x32xbf16>
      %c1_76 = arith.constant 1 : index
      %c0_77 = arith.constant 0 : index
      %c0_78 = arith.constant 0 : index
      %107 = vector.load %arg8[%c1_76, %c0_77, %c0_78] : memref<2x8x32xbf16, #tpu.memory_space<vmem>>, vector<1x8x32xbf16>
      %108 = vector.shape_cast %107 : vector<1x8x32xbf16> to vector<8x32xbf16>
      %109 = vector.shape_cast %106 : vector<8x32xbf16> to vector<1x8x32xbf16>
      tpu.vector_store %arg8[%c1_76, %c0_77, %c0_78], %109 {strides = array<i32>} : memref<2x8x32xbf16, #tpu.memory_space<vmem>>, vector<1x8x32xbf16>,
    } else {
    }
    %c0 = arith.constant 0 : index
    %c0_1 = arith.constant 0 : index
    %c0_2 = arith.constant 0 : index
    %3 = vector.load %arg5[%c0, %c0_1, %c0_2] : memref<1x8x64xf32, #tpu.memory_space<vmem>>, vector<1x8x64xf32>
    %4 = vector.shape_cast %3 : vector<1x8x64xf32> to vector<8x64xf32>
    %c0_3 = arith.constant 0 : index
    %c0_4 = arith.constant 0 : index
    %c0_5 = arith.constant 0 : index
    %5 = vector.load %arg6[%c0_3, %c0_4, %c0_5] : memref<1x8x64xf32, #tpu.memory_space<vmem>>, vector<1x8x64xf32>
    %6 = vector.shape_cast %5 : vector<1x8x64xf32> to vector<8x64xf32>
    %c0_6 = arith.constant 0 : index
    %c0_7 = arith.constant 0 : index
    %c0_8 = arith.constant 0 : index
    %7 = vector.load %arg8[%c0_6, %c0_7, %c0_8] : memref<2x8x32xbf16, #tpu.memory_space<vmem>>, vector<1x8x32xbf16>
    %8 = vector.shape_cast %7 : vector<1x8x32xbf16> to vector<8x32xbf16>
    %9 = vector.extract_strided_slice %4 {offsets = [0, 0], sizes = [8, 32], strides = [1, 1]} : vector<8x64xf32> to vector<8x32xf32>
    %10 = arith.truncf %9 : vector<8x32xf32> to vector<8x32xbf16>
    %cst = arith.constant dense<0.000000e+00> : vector<8x8xf32>
    %11 = tpu.matmul %8, %10, %cst {dimension_numbers = #tpu.dot_dimension_numbers<[1], [1], [0], [0], [0, 0, 1, 0], [], []>} : vector<8x32xbf16>, vector<8x32xbf16>, vector<8x8xf32> -> vector<8x8xf32>
    %c0_9 = arith.constant 0 : index
    %c0_10 = arith.constant 0 : index
    %c0_11 = arith.constant 0 : index
    %12 = vector.load %arg9[%c0_9, %c0_10, %c0_11] : memref<2x8x1xf32, #tpu.memory_space<vmem>>, vector<1x8x1xf32>
    %13 = vector.shape_cast %12 : vector<1x8x1xf32> to vector<8x1xf32>
    %cst_12 = arith.constant dense<0xFF800000> : vector<8xf32>
    %14 = vector.multi_reduction <maximumf>, %11, %cst_12 [1] : vector<8x8xf32> to vector<8xf32>
    %15 = vector.shape_cast %14 : vector<8xf32> to vector<8x1xf32>
    %16 = arith.maximumf %13, %15 : vector<8x1xf32>
    %17 = arith.subf %13, %16 : vector<8x1xf32>
    %18 = math.exp %17 : vector<8x1xf32>
    %19 = vector.broadcast %16 : vector<8x1xf32> to vector<8x8xf32>
    %20 = arith.subf %11, %19 : vector<8x8xf32>
    %21 = math.exp %20 : vector<8x8xf32>
    %c0_13 = arith.constant 0 : index
    %c0_14 = arith.constant 0 : index
    %c0_15 = arith.constant 0 : index
    %22 = vector.load %arg10[%c0_13, %c0_14, %c0_15] : memref<2x8x1xf32, #tpu.memory_space<vmem>>, vector<1x8x1xf32>
    %23 = vector.shape_cast %22 : vector<1x8x1xf32> to vector<8x1xf32>
    %24 = arith.mulf %18, %23 : vector<8x1xf32>
    %cst_16 = arith.constant dense<0.000000e+00> : vector<8xf32>
    %25 = vector.multi_reduction <add>, %21, %cst_16 [1] : vector<8x8xf32> to vector<8xf32>
    %26 = vector.shape_cast %25 : vector<8xf32> to vector<8x1xf32>
    %27 = arith.addf %24, %26 : vector<8x1xf32>
    %c0_17 = arith.constant 0 : index
    %c0_18 = arith.constant 0 : index
    %c0_19 = arith.constant 0 : index
    %28 = vector.load %arg10[%c0_17, %c0_18, %c0_19] : memref<2x8x1xf32, #tpu.memory_space<vmem>>, vector<1x8x1xf32>
    %29 = vector.shape_cast %28 : vector<1x8x1xf32> to vector<8x1xf32>
    %30 = vector.shape_cast %27 : vector<8x1xf32> to vector<1x8x1xf32>
    tpu.vector_store %arg10[%c0_17, %c0_18, %c0_19], %30 {strides = array<i32>} : memref<2x8x1xf32, #tpu.memory_space<vmem>>, vector<1x8x1xf32>,
    %31 = vector.extract_strided_slice %6 {offsets = [0, 0], sizes = [8, 32], strides = [1, 1]} : vector<8x64xf32> to vector<8x32xf32>
    %32 = arith.truncf %31 : vector<8x32xf32> to vector<8x32xbf16>
    %c0_20 = arith.constant 0 : index
    %c0_21 = arith.constant 0 : index
    %c0_22 = arith.constant 0 : index
    %33 = vector.load %arg11[%c0_20, %c0_21, %c0_22] : memref<2x8x32xf32, #tpu.memory_space<vmem>>, vector<1x8x32xf32>
    %34 = vector.shape_cast %33 : vector<1x8x32xf32> to vector<8x32xf32>
    %35 = vector.broadcast %18 : vector<8x1xf32> to vector<8x32xf32>
    %36 = arith.mulf %35, %34 : vector<8x32xf32>
    %37 = arith.truncf %21 : vector<8x8xf32> to vector<8x8xbf16>
    %cst_23 = arith.constant dense<0.000000e+00> : vector<8x32xf32>
    %38 = tpu.matmul %37, %32, %cst_23 {dimension_numbers = #tpu.dot_dimension_numbers<[1], [0], [0], [1], [0, 0, 1, 1], [], []>} : vector<8x8xbf16>, vector<8x32xbf16>, vector<8x32xf32> -> vector<8x32xf32>
    %39 = arith.addf %36, %38 : vector<8x32xf32>
    %c0_24 = arith.constant 0 : index
    %c0_25 = arith.constant 0 : index
    %c0_26 = arith.constant 0 : index
    %40 = vector.load %arg11[%c0_24, %c0_25, %c0_26] : memref<2x8x32xf32, #tpu.memory_space<vmem>>, vector<1x8x32xf32>
    %41 = vector.shape_cast %40 : vector<1x8x32xf32> to vector<8x32xf32>
    %42 = vector.shape_cast %39 : vector<8x32xf32> to vector<1x8x32xf32>
    tpu.vector_store %arg11[%c0_24, %c0_25, %c0_26], %42 {strides = array<i32>} : memref<2x8x32xf32, #tpu.memory_space<vmem>>, vector<1x8x32xf32>,
    %c0_27 = arith.constant 0 : index
    %c0_28 = arith.constant 0 : index
    %c0_29 = arith.constant 0 : index
    %43 = vector.load %arg9[%c0_27, %c0_28, %c0_29] : memref<2x8x1xf32, #tpu.memory_space<vmem>>, vector<1x8x1xf32>
    %44 = vector.shape_cast %43 : vector<1x8x1xf32> to vector<8x1xf32>
    %45 = vector.shape_cast %16 : vector<8x1xf32> to vector<1x8x1xf32>
    tpu.vector_store %arg9[%c0_27, %c0_28, %c0_29], %45 {strides = array<i32>} : memref<2x8x1xf32, #tpu.memory_space<vmem>>, vector<1x8x1xf32>,
    %c1 = arith.constant 1 : index
    %c0_30 = arith.constant 0 : index
    %c0_31 = arith.constant 0 : index
    %46 = vector.load %arg8[%c1, %c0_30, %c0_31] : memref<2x8x32xbf16, #tpu.memory_space<vmem>>, vector<1x8x32xbf16>
    %47 = vector.shape_cast %46 : vector<1x8x32xbf16> to vector<8x32xbf16>
    %48 = vector.extract_strided_slice %4 {offsets = [0, 32], sizes = [8, 32], strides = [1, 1]} : vector<8x64xf32> to vector<8x32xf32>
    %49 = arith.truncf %48 : vector<8x32xf32> to vector<8x32xbf16>
    %cst_32 = arith.constant dense<0.000000e+00> : vector<8x8xf32>
    %50 = tpu.matmul %47, %49, %cst_32 {dimension_numbers = #tpu.dot_dimension_numbers<[1], [1], [0], [0], [0, 0, 1, 0], [], []>} : vector<8x32xbf16>, vector<8x32xbf16>, vector<8x8xf32> -> vector<8x8xf32>
    %c1_33 = arith.constant 1 : index
    %c0_34 = arith.constant 0 : index
    %c0_35 = arith.constant 0 : index
    %51 = vector.load %arg9[%c1_33, %c0_34, %c0_35] : memref<2x8x1xf32, #tpu.memory_space<vmem>>, vector<1x8x1xf32>
    %52 = vector.shape_cast %51 : vector<1x8x1xf32> to vector<8x1xf32>
    %cst_36 = arith.constant dense<0xFF800000> : vector<8xf32>
    %53 = vector.multi_reduction <maximumf>, %50, %cst_36 [1] : vector<8x8xf32> to vector<8xf32>
    %54 = vector.shape_cast %53 : vector<8xf32> to vector<8x1xf32>
    %55 = arith.maximumf %52, %54 : vector<8x1xf32>
    %56 = arith.subf %52, %55 : vector<8x1xf32>
    %57 = math.exp %56 : vector<8x1xf32>
    %58 = vector.broadcast %55 : vector<8x1xf32> to vector<8x8xf32>
    %59 = arith.subf %50, %58 : vector<8x8xf32>
    %60 = math.exp %59 : vector<8x8xf32>
    %c1_37 = arith.constant 1 : index
    %c0_38 = arith.constant 0 : index
    %c0_39 = arith.constant 0 : index
    %61 = vector.load %arg10[%c1_37, %c0_38, %c0_39] : memref<2x8x1xf32, #tpu.memory_space<vmem>>, vector<1x8x1xf32>
    %62 = vector.shape_cast %61 : vector<1x8x1xf32> to vector<8x1xf32>
    %63 = arith.mulf %57, %62 : vector<8x1xf32>
    %cst_40 = arith.constant dense<0.000000e+00> : vector<8xf32>
    %64 = vector.multi_reduction <add>, %60, %cst_40 [1] : vector<8x8xf32> to vector<8xf32>
    %65 = vector.shape_cast %64 : vector<8xf32> to vector<8x1xf32>
    %66 = arith.addf %63, %65 : vector<8x1xf32>
    %c1_41 = arith.constant 1 : index
    %c0_42 = arith.constant 0 : index
    %c0_43 = arith.constant 0 : index
    %67 = vector.load %arg10[%c1_41, %c0_42, %c0_43] : memref<2x8x1xf32, #tpu.memory_space<vmem>>, vector<1x8x1xf32>
    %68 = vector.shape_cast %67 : vector<1x8x1xf32> to vector<8x1xf32>
    %69 = vector.shape_cast %66 : vector<8x1xf32> to vector<1x8x1xf32>
    tpu.vector_store %arg10[%c1_41, %c0_42, %c0_43], %69 {strides = array<i32>} : memref<2x8x1xf32, #tpu.memory_space<vmem>>, vector<1x8x1xf32>,
    %70 = vector.extract_strided_slice %6 {offsets = [0, 32], sizes = [8, 32], strides = [1, 1]} : vector<8x64xf32> to vector<8x32xf32>
    %71 = arith.truncf %70 : vector<8x32xf32> to vector<8x32xbf16>
    %c1_44 = arith.constant 1 : index
    %c0_45 = arith.constant 0 : index
    %c0_46 = arith.constant 0 : index
    %72 = vector.load %arg11[%c1_44, %c0_45, %c0_46] : memref<2x8x32xf32, #tpu.memory_space<vmem>>, vector<1x8x32xf32>
    %73 = vector.shape_cast %72 : vector<1x8x32xf32> to vector<8x32xf32>
    %74 = vector.broadcast %57 : vector<8x1xf32> to vector<8x32xf32>
    %75 = arith.mulf %74, %73 : vector<8x32xf32>
    %76 = arith.truncf %60 : vector<8x8xf32> to vector<8x8xbf16>
    %cst_47 = arith.constant dense<0.000000e+00> : vector<8x32xf32>
    %77 = tpu.matmul %76, %71, %cst_47 {dimension_numbers = #tpu.dot_dimension_numbers<[1], [0], [0], [1], [0, 0, 1, 1], [], []>} : vector<8x8xbf16>, vector<8x32xbf16>, vector<8x32xf32> -> vector<8x32xf32>
    %78 = arith.addf %75, %77 : vector<8x32xf32>
    %c1_48 = arith.constant 1 : index
    %c0_49 = arith.constant 0 : index
    %c0_50 = arith.constant 0 : index
    %79 = vector.load %arg11[%c1_48, %c0_49, %c0_50] : memref<2x8x32xf32, #tpu.memory_space<vmem>>, vector<1x8x32xf32>
    %80 = vector.shape_cast %79 : vector<1x8x32xf32> to vector<8x32xf32>
    %81 = vector.shape_cast %78 : vector<8x32xf32> to vector<1x8x32xf32>
    tpu.vector_store %arg11[%c1_48, %c0_49, %c0_50], %81 {strides = array<i32>} : memref<2x8x32xf32, #tpu.memory_space<vmem>>, vector<1x8x32xf32>,
    %c1_51 = arith.constant 1 : index
    %c0_52 = arith.constant 0 : index
    %c0_53 = arith.constant 0 : index
    %82 = vector.load %arg9[%c1_51, %c0_52, %c0_53] : memref<2x8x1xf32, #tpu.memory_space<vmem>>, vector<1x8x1xf32>
    %83 = vector.shape_cast %82 : vector<1x8x1xf32> to vector<8x1xf32>
    %84 = vector.shape_cast %55 : vector<8x1xf32> to vector<1x8x1xf32>
    tpu.vector_store %arg9[%c1_51, %c0_52, %c0_53], %84 {strides = array<i32>} : memref<2x8x1xf32, #tpu.memory_space<vmem>>, vector<1x8x1xf32>,
    %c0_i32_54 = arith.constant 0 : i32
    %85 = arith.cmpi eq, %arg3, %c0_i32_54 : i32
    %86 = arith.extui %85 : i1 to i32
    %c0_i32_55 = arith.constant 0 : i32
    %87 = arith.cmpi ne, %86, %c0_i32_55 : i32
    scf.if %87 {
      %c0_56 = arith.constant 0 : index
      %c0_57 = arith.constant 0 : index
      %c0_58 = arith.constant 0 : index
      %88 = vector.load %arg10[%c0_56, %c0_57, %c0_58] : memref<2x8x1xf32, #tpu.memory_space<vmem>>, vector<1x8x1xf32>
      %89 = vector.shape_cast %88 : vector<1x8x1xf32> to vector<8x1xf32>
      %90 = tpu.reciprocal %89 {approx = true} : vector<8x1xf32> -> vector<8x1xf32>
      %c0_59 = arith.constant 0 : index
      %c0_60 = arith.constant 0 : index
      %c0_61 = arith.constant 0 : index
      %91 = vector.load %arg11[%c0_59, %c0_60, %c0_61] : memref<2x8x32xf32, #tpu.memory_space<vmem>>, vector<1x8x32xf32>
      %92 = vector.shape_cast %91 : vector<1x8x32xf32> to vector<8x32xf32>
      %93 = vector.broadcast %90 : vector<8x1xf32> to vector<8x32xf32>
      %94 = arith.mulf %92, %93 : vector<8x32xf32>
      %c0_62 = arith.constant 0 : index
      %c0_63 = arith.constant 0 : index
      %c0_64 = arith.constant 0 : index
      %95 = vector.load %arg7[%c0_62, %c0_63, %c0_64] : memref<1x8x64xf32, #tpu.memory_space<vmem>>, vector<1x8x32xf32>
      %96 = vector.shape_cast %95 : vector<1x8x32xf32> to vector<8x32xf32>
      %97 = vector.shape_cast %94 : vector<8x32xf32> to vector<1x8x32xf32>
      tpu.vector_store %arg7[%c0_62, %c0_63, %c0_64], %97 {strides = array<i32>} : memref<1x8x64xf32, #tpu.memory_space<vmem>>, vector<1x8x32xf32>,
      %c1_65 = arith.constant 1 : index
      %c0_66 = arith.constant 0 : index
      %c0_67 = arith.constant 0 : index
      %98 = vector.load %arg10[%c1_65, %c0_66, %c0_67] : memref<2x8x1xf32, #tpu.memory_space<vmem>>, vector<1x8x1xf32>
      %99 = vector.shape_cast %98 : vector<1x8x1xf32> to vector<8x1xf32>
      %100 = tpu.reciprocal %99 {approx = true} : vector<8x1xf32> -> vector<8x1xf32>
      %c1_68 = arith.constant 1 : index
      %c0_69 = arith.constant 0 : index
      %c0_70 = arith.constant 0 : index
      %101 = vector.load %arg11[%c1_68, %c0_69, %c0_70] : memref<2x8x32xf32, #tpu.memory_space<vmem>>, vector<1x8x32xf32>
      %102 = vector.shape_cast %101 : vector<1x8x32xf32> to vector<8x32xf32>
      %103 = vector.broadcast %100 : vector<8x1xf32> to vector<8x32xf32>
      %104 = arith.mulf %102, %103 : vector<8x32xf32>
      %c0_71 = arith.constant 0 : index
      %c0_72 = arith.constant 0 : index
      %c32 = arith.constant 32 : index
      %105 = vector.load %arg7[%c0_71, %c0_72, %c32] : memref<1x8x64xf32, #tpu.memory_space<vmem>>, vector<1x8x32xf32>
      %106 = vector.shape_cast %105 : vector<1x8x32xf32> to vector<8x32xf32>
      %107 = vector.shape_cast %104 : vector<8x32xf32> to vector<1x8x32xf32>
      tpu.vector_store %arg7[%c0_71, %c0_72, %c32], %107 {strides = array<i32>} : memref<1x8x64xf32, #tpu.memory_space<vmem>>, vector<1x8x32xf32>,
    } else {
    }
    return
  }
  func.func @transform_0(%arg0: i32, %arg1: i32, %arg2: i32, %arg3: i32) -> (i32, i32, i32) {
    %c0_i32 = arith.constant 0 : i32
    return %arg0, %arg2, %arg1 : i32, i32, i32
  }
  func.func @transform_1(%arg0: i32, %arg1: i32, %arg2: i32, %arg3: i32) -> (i32, i32, i32) {
    %c0_i32 = arith.constant 0 : i32
    return %arg0, %arg3, %arg1 : i32, i32, i32
  }
  func.func @transform_2(%arg0: i32, %arg1: i32, %arg2: i32, %arg3: i32) -> (i32, i32, i32) {
    %c0_i32 = arith.constant 0 : i32
    return %arg0, %arg3, %arg1 : i32, i32, i32
  }
  func.func @transform_3(%arg0: i32, %arg1: i32, %arg2: i32, %arg3: i32) -> (i32, i32, i32) {
    %c0_i32 = arith.constant 0 : i32
    return %arg0, %arg2, %arg1 : i32, i32, i32
  }
}

</mosaic_0001>

<llo_original>
// kernel: tpu_custom_call.1
$region0: #{tpu_custom_call.1}
  #allocation0 [shape = 'u32[]', space=smem, size = 0x4, offset = 0x4, fixed_abs, tag = 'smem constant byte address 0x4 - core index']
  #allocation1 [shape = 'u32[144,128]{1,0:T(1,128)}', space=vmem, size = 0x12000, scoped, tag = 'internal scratch']
  #allocation2 [shape = 'bf16[2,8,32]{2,1,0:T(8,128)(2,1)}', space=vmem, size = 0x1000, scoped, tag = 'scratch operand']
  #allocation3 [shape = 'f32[2,8,1]{2,1,0:T(8,128)}', space=vmem, size = 0x2000, scoped, tag = 'scratch operand']
  #allocation4 [shape = 'f32[2,8,1]{2,1,0:T(8,128)}', space=vmem, size = 0x2000, scoped, tag = 'scratch operand']
  #allocation5 [shape = 'f32[2,8,32]{2,1,0:T(8,128)}', space=vmem, size = 0x2000, scoped, tag = 'scratch operand']
  %s0 = inlined_call_operand.hbm [shape: f32[2,8,64], index: 0, kind: input, shape index: {}]
  %s1 = inlined_call_operand.hbm [shape: f32[2,8,64], index: 1, kind: input, shape index: {}]
  %s2 = inlined_call_operand.hbm [shape: f32[2,8,64], index: 2, kind: input, shape index: {}]
  %s3 = inlined_call_operand.hbm [shape: f32[2,8,64], index: 3, kind: output, shape index: {}]
  %s4 = sld [smem:[#allocation0]]
  $region65: #{tpu_custom_call.1} parent=0
    _
  %s6 = ssub.s32 1, %s4
  %s7 = scalar_select 0, %s6, %s4
  $region1: #{tpu_custom_call.1} parent=0
    #allocation6 [shape = 'u8[8192]{0}', space=vmem, size = 0x2000, scoped, tag = 'input window, operand 0']
    #allocation7 [shape = 's32[2]{0}', space=sflag, size = 0x8, scoped, tag = 'scoped memory for tpu_custom_call.1']
    #allocation8 [shape = 's32[2]{0}', space=sflag, size = 0x8, scoped, tag = 'scoped memory for tpu_custom_call.1']
    #allocation9 [shape = 'u8[8192]{0}', space=vmem, size = 0x2000, scoped, tag = 'input window, operand 1']
    #allocation10 [shape = 's32[2]{0}', space=sflag, size = 0x8, scoped, tag = 'scoped memory for tpu_custom_call.1']
    #allocation11 [shape = 'u8[8192]{0}', space=vmem, size = 0x2000, scoped, tag = 'input window, operand 2']
    #allocation12 [shape = 'u8[8192]{0}', space=vmem, size = 0x2000, scoped, tag = 'output window, operand 0']
    %8 = vsyncpa [#allocation7], 0
    %s9 = scalar_lea.sflag [#allocation7], 1
    %10 = vsyncpa %s9, 0
    %11 = vsyncpa [#allocation10], 0
    %s12 = scalar_lea.sflag [#allocation10], 1
    %13 = vsyncpa %s12, 0
    %14 = vsyncpa [#allocation8], 0
    %s15 = scalar_lea.sflag [#allocation8], 1
    %16 = vsyncpa %s15, 0
    loop: start=0, step=1, limit=4
    $region2: #{tpu_custom_call.1} parent=1 // loop_pre_header
      _
    $region3: #{tpu_custom_call.1} parent=1 // loop_header
      %s18 = sphi 0, %s22
      %p19 = scmp.ge.s32.totalorder %s18, 4
      %s25 = sphi 0, %s51
      %s26 = sphi 0, %s47
      %s27 = sphi 0, %s43
      %s28 = sphi 0, %s39
      %s29 = sphi 0, %s25
      %s30 = sphi 0, %s26
      %s31 = sphi 0, %s27
      %s32 = sphi 0, %s28
      %s33 = sphi 0, %s29
      %s34 = sphi 0, %s30
      %s35 = sphi 0, %s31
      %s36 = sphi 0, %s32
      %s58 = sphi 0, %s60
      %s61 = sphi 0, %s58
      %s62 = sphi 0, %s61
      %s78 = sphi 0, %s62
      %s88 = sphi 0, %s90
      %s91 = sphi 0, %s88
      %s92 = sphi 0, %s91
      %s108 = sphi 0, %s92
      %s118 = sphi 0, %s120
      %s121 = sphi 0, %s118
      %s122 = sphi 0, %s121
      %s138 = sphi 0, %s122
      %s148 = sphi 0, %s150
      %s151 = sphi 0, %s148
      %s152 = sphi 0, %s151
      %s168 = sphi 0, %s152
    $region4: #{tpu_custom_call.1} parent=1 // loop_header_branch
      %21 = sbr.rel (%p19) target = $region8
    $region5: #{tpu_custom_call.1} parent=1 // loop_body
      %s23 = ssub.s32 %s18, 1
      %s24 = ssub.s32 %s18, 2
      %s37 = sadd.s32 1, %s28
      %p38 = scmp.ge.s32.totalorder %s37, 1
      %s39 = scalar_select %p38, 0, %s37
      %s40 = sadd.s32 1, %s27
      %s41 = scalar_select %p38, %s40, %s27
      %p42 = scmp.ge.s32.totalorder %s41, 1
      %s43 = scalar_select %p42, 0, %s41
      %s44 = sadd.s32 1, %s26
      %s45 = scalar_select %p42, %s44, %s26
      %p46 = scmp.ge.s32.totalorder %s45, 1
      %s47 = scalar_select %p46, 0, %s45
      %s48 = sadd.s32 1, %s25
      %s49 = scalar_select %p46, %s48, %s25
      %p50 = scmp.ge.s32.totalorder %s49, 2
      %s51 = scalar_select %p50, 0, %s49
      %s52 = ssub.s32 %s25, %s51
      %s53 = ssub.s32 %s27, %s43
      %s54 = sor.u32 %s52, %s53
      %s55 = ssub.s32 %s26, %s47
      %s56 = sor.u32 %s54, %s55
      %p57 = scmp.eq.s32.totalorder %s56, 0
      %s59 = sadd.s32 %s58, 1
      %s60 = scalar_select %p57, %s58, %s59
      %p63 = pneg %p57
      %p64 = scmp.eq.s32.totalorder %s18, 1
      %p65 = por %p63, %p64
      %p66 = scmp.ne.s32.totalorder %s58, %s61
      %p67 = scmp.eq.s32.totalorder %s18, 0
      %p68 = por %p66, %p67
      %p69 = scmp.ne.s32.totalorder %s58, %s61
      %p70 = scmp.eq.s32.totalorder %s23, 1
      %p71 = por %p69, %p70
      %p72 = scmp.ne.s32.totalorder %s61, %s62
      %p73 = scmp.eq.s32.totalorder %s23, 0
      %p74 = por %p72, %p73
      %p75 = scmp.ne.s32.totalorder %s61, %s62
      %p76 = scmp.eq.s32.totalorder %s24, 1
      %p77 = por %p75, %p76
      %p79 = scmp.ne.s32.totalorder %s62, %s78
      %p80 = scmp.eq.s32.totalorder %s24, 0
      %p81 = por %p79, %p80
      %s82 = ssub.s32 %s25, %s51
      %s83 = ssub.s32 %s28, %s39
      %s84 = sor.u32 %s82, %s83
      %s85 = ssub.s32 %s26, %s47
      %s86 = sor.u32 %s84, %s85
      %p87 = scmp.eq.s32.totalorder %s86, 0
      %s89 = sadd.s32 %s88, 1
      %s90 = scalar_select %p87, %s88, %s89
      %p93 = pneg %p87
      %p94 = scmp.eq.s32.totalorder %s18, 1
      %p95 = por %p93, %p94
      %p96 = scmp.ne.s32.totalorder %s88, %s91
      %p97 = scmp.eq.s32.totalorder %s18, 0
      %p98 = por %p96, %p97
      %p99 = scmp.ne.s32.totalorder %s88, %s91
      %p100 = scmp.eq.s32.totalorder %s23, 1
      %p101 = por %p99, %p100
      %p102 = scmp.ne.s32.totalorder %s91, %s92
      %p103 = scmp.eq.s32.totalorder %s23, 0
      %p104 = por %p102, %p103
      %p105 = scmp.ne.s32.totalorder %s91, %s92
      %p106 = scmp.eq.s32.totalorder %s24, 1
      %p107 = por %p105, %p106
      %p109 = scmp.ne.s32.totalorder %s92, %s108
      %p110 = scmp.eq.s32.totalorder %s24, 0
      %p111 = por %p109, %p110
      %s112 = ssub.s32 %s25, %s51
      %s113 = ssub.s32 %s28, %s39
      %s114 = sor.u32 %s112, %s113
      %s115 = ssub.s32 %s26, %s47
      %s116 = sor.u32 %s114, %s115
      %p117 = scmp.eq.s32.totalorder %s116, 0
      %s119 = sadd.s32 %s118, 1
      %s120 = scalar_select %p117, %s118, %s119
      %p123 = pneg %p117
      %p124 = scmp.eq.s32.totalorder %s18, 1
      %p125 = por %p123, %p124
      %p126 = scmp.ne.s32.totalorder %s118, %s121
      %p127 = scmp.eq.s32.totalorder %s18, 0
      %p128 = por %p126, %p127
      %p129 = scmp.ne.s32.totalorder %s118, %s121
      %p130 = scmp.eq.s32.totalorder %s23, 1
      %p131 = por %p129, %p130
      %p132 = scmp.ne.s32.totalorder %s121, %s122
      %p133 = scmp.eq.s32.totalorder %s23, 0
      %p134 = por %p132, %p133
      %p135 = scmp.ne.s32.totalorder %s121, %s122
      %p136 = scmp.eq.s32.totalorder %s24, 1
      %p137 = por %p135, %p136
      %p139 = scmp.ne.s32.totalorder %s122, %s138
      %p140 = scmp.eq.s32.totalorder %s24, 0
      %p141 = por %p139, %p140
      %s142 = ssub.s32 %s25, %s51
      %s143 = ssub.s32 %s27, %s43
      %s144 = sor.u32 %s142, %s143
      %s145 = ssub.s32 %s26, %s47
      %s146 = sor.u32 %s144, %s145
      %p147 = scmp.eq.s32.totalorder %s146, 0
      %s149 = sadd.s32 %s148, 1
      %s150 = scalar_select %p147, %s148, %s149
      %p153 = pneg %p147
      %p154 = scmp.eq.s32.totalorder %s18, 1
      %p155 = por %p153, %p154
      %p156 = scmp.ne.s32.totalorder %s148, %s151
      %p157 = scmp.eq.s32.totalorder %s18, 0
      %p158 = por %p156, %p157
      %p159 = scmp.ne.s32.totalorder %s148, %s151
      %p160 = scmp.eq.s32.totalorder %s23, 1
      %p161 = por %p159, %p160
      %p162 = scmp.ne.s32.totalorder %s151, %s152
      %p163 = scmp.eq.s32.totalorder %s23, 0
      %p164 = por %p162, %p163
      %p165 = scmp.ne.s32.totalorder %s151, %s152
      %p166 = scmp.eq.s32.totalorder %s24, 1
      %p167 = por %p165, %p166
      %p169 = scmp.ne.s32.totalorder %s152, %s168
      %p170 = scmp.eq.s32.totalorder %s24, 0
      %p171 = por %p169, %p170
      %p172 = scmp.le.s32.totalorder 1, %s18
      %p173 = scmp.lt.s32.totalorder %s18, 3
      %p174 = pnand %p172, %p173
      %p175 = pneg %p174
      // Predicated region
      $region9: #{tpu_custom_call.1} parent=5 // pred_check
        _
      $region10: #{tpu_custom_call.1} parent=5 // pred_check_branch
        %177 = sbr.rel (%p174) target = $region12
      $region11: #{tpu_custom_call.1} parent=5 // pred_region
        %s178 = ssub.s32 %s18, 1
      $region12: #{tpu_custom_call.1} parent=5 // pred_fallthru
        _
      %p179 = scmp.lt.s32.totalorder %s18, 2
      // Predicated region
      $region13: #{tpu_custom_call.1} parent=5 // pred_check
        %p180 = pneg %p179
      $region14: #{tpu_custom_call.1} parent=5 // pred_check_branch
        %182 = sbr.rel (%p180) target = $region16
      $region15: #{tpu_custom_call.1} parent=5 // pred_region
        // Predicated region
        $region17: #{tpu_custom_call.1} parent=15 // pred_check
          %p183 = pneg %p68
        $region18: #{tpu_custom_call.1} parent=15 // pred_check_branch
          %185 = sbr.rel (%p183) target = $region20
        $region19: #{tpu_custom_call.1} parent=15 // pred_region
          %s186 = sand.u32 %s58, 1
          %s187 = scalar_lea.sflag [#allocation7], %s186
          %s188 = sand.u32 %s58, 1
          %s189 = smul.addr %s188, 8
          %s190 = scalar_lea.vmem [#allocation6], %s189
          %s192 = ssub.s32 128, 128
          %193 = vsyncadd %s187, %s192
          %s194 = sadd.s32 %s26, %s27
          %s195 = sadd.s32 %s194, %s25
          %s196 = smul.addr %s195, 128
          %s197 = scalar_lea.hbm %s0, %s196
          %s199 = sshll.u32 %s190, 4
          %s200 = int_to_ptr.vmem [resolvable:$true] %s199
          %202 = dma.hbm_to_vmem [thread:$0]  %s197, 128, %s200, %s187
        $region20: #{tpu_custom_call.1} parent=15 // pred_fallthru
          _
        // Predicated region
        $region21: #{tpu_custom_call.1} parent=15 // pred_check
          %p203 = pneg %p98
        $region22: #{tpu_custom_call.1} parent=15 // pred_check_branch
          %205 = sbr.rel (%p203) target = $region24
        $region23: #{tpu_custom_call.1} parent=15 // pred_region
          %s206 = sand.u32 %s18, 1
          %s207 = scalar_lea.sflag [#allocation10], %s206
          %s208 = sand.u32 %s88, 1
          %s209 = smul.addr %s208, 8
          %s210 = scalar_lea.vmem [#allocation9], %s209
          %s212 = ssub.s32 128, 128
          %213 = vsyncadd %s207, %s212
          %s214 = sadd.s32 %s26, %s28
          %s215 = sadd.s32 %s214, %s25
          %s216 = smul.addr %s215, 128
          %s217 = scalar_lea.hbm %s1, %s216
          %s219 = sshll.u32 %s210, 4
          %s220 = int_to_ptr.vmem [resolvable:$true] %s219
          %222 = dma.hbm_to_vmem [thread:$0]  %s217, 128, %s220, %s207
        $region24: #{tpu_custom_call.1} parent=15 // pred_fallthru
          _
        // Predicated region
        $region25: #{tpu_custom_call.1} parent=15 // pred_check
          %p223 = pneg %p128
        $region26: #{tpu_custom_call.1} parent=15 // pred_check_branch
          %225 = sbr.rel (%p223) target = $region28
        $region27: #{tpu_custom_call.1} parent=15 // pred_region
          %s226 = sand.u32 %s18, 1
          %s227 = scalar_lea.sflag [#allocation10], %s226
          %s228 = sand.u32 %s118, 1
          %s229 = smul.addr %s228, 8
          %s230 = scalar_lea.vmem [#allocation11], %s229
          %s232 = ssub.s32 128, 128
          %233 = vsyncadd %s227, %s232
          %s234 = sadd.s32 %s26, %s28
          %s235 = sadd.s32 %s234, %s25
          %s236 = smul.addr %s235, 128
          %s237 = scalar_lea.hbm %s2, %s236
          %s239 = sshll.u32 %s230, 4
          %s240 = int_to_ptr.vmem [resolvable:$true] %s239
          %242 = dma.hbm_to_vmem [thread:$0]  %s237, 128, %s240, %s227
        $region28: #{tpu_custom_call.1} parent=15 // pred_fallthru
          _
      $region16: #{tpu_custom_call.1} parent=5 // pred_fallthru
        _
      %p243 = scmp.le.s32.totalorder 1, %s18
      %p244 = scmp.lt.s32.totalorder %s18, 3
      %p245 = pnand %p243, %p244
      %p246 = pneg %p245
      // Predicated region
      $region29: #{tpu_custom_call.1} parent=5 // pred_check
        _
      $region30: #{tpu_custom_call.1} parent=5 // pred_check_branch
        %248 = sbr.rel (%p245) target = $region32
      $region31: #{tpu_custom_call.1} parent=5 // pred_region
        %s249 = ssub.s32 %s18, 1
        %s250 = sand.u32 %s61, 1
        %s251 = scalar_lea.sflag [#allocation7], %s250
        %s252 = sand.u32 %s61, 1
        %s253 = smul.addr %s252, 8
        %s254 = scalar_lea.vmem [#allocation6], %s253
        // Predicated region
        $region33: #{tpu_custom_call.1} parent=31 // pred_check
          %p255 = pneg %p74
        $region34: #{tpu_custom_call.1} parent=31 // pred_check_branch
          %257 = sbr.rel (%p255) target = $region36
        $region35: #{tpu_custom_call.1} parent=31 // pred_region
          %258 = dma.done %s251, 128
        $region36: #{tpu_custom_call.1} parent=31 // pred_fallthru
          _
        %s259 = sand.u32 %s23, 1
        %s260 = scalar_lea.sflag [#allocation10], %s259
        %s261 = sand.u32 %s91, 1
        %s262 = smul.addr %s261, 8
        %s263 = scalar_lea.vmem [#allocation9], %s262
        // Predicated region
        $region37: #{tpu_custom_call.1} parent=31 // pred_check
          %p264 = pneg %p104
        $region38: #{tpu_custom_call.1} parent=31 // pred_check_branch
          %266 = sbr.rel (%p264) target = $region40
        $region39: #{tpu_custom_call.1} parent=31 // pred_region
          %267 = dma.done %s260, 128
        $region40: #{tpu_custom_call.1} parent=31 // pred_fallthru
          _
        %s268 = sand.u32 %s23, 1
        %s269 = scalar_lea.sflag [#allocation10], %s268
        %s270 = sand.u32 %s121, 1
        %s271 = smul.addr %s270, 8
        %s272 = scalar_lea.vmem [#allocation11], %s271
        // Predicated region
        $region41: #{tpu_custom_call.1} parent=31 // pred_check
          %p273 = pneg %p134
        $region42: #{tpu_custom_call.1} parent=31 // pred_check_branch
          %275 = sbr.rel (%p273) target = $region44
        $region43: #{tpu_custom_call.1} parent=31 // pred_region
          %276 = dma.done %s269, 128
        $region44: #{tpu_custom_call.1} parent=31 // pred_fallthru
          _
        %s277 = sand.u32 %s61, 1
        %s278 = scalar_lea.sflag [#allocation7], %s277
        %s279 = sand.u32 %s61, 1
        %s280 = smul.addr %s279, 8
        %s281 = scalar_lea.vmem [#allocation6], %s280
        %p282 = pneg %p74
        %p283 = pneg %p71
        %s284 = sand.u32 %s23, 1
        %s285 = scalar_lea.sflag [#allocation10], %s284
        %s286 = sand.u32 %s91, 1
        %s287 = smul.addr %s286, 8
        %s288 = scalar_lea.vmem [#allocation9], %s287
        %p289 = pneg %p104
        %p290 = pneg %p101
        %s291 = sand.u32 %s23, 1
        %s292 = scalar_lea.sflag [#allocation10], %s291
        %s293 = sand.u32 %s121, 1
        %s294 = smul.addr %s293, 8
        %s295 = scalar_lea.vmem [#allocation11], %s294
        %p296 = pneg %p134
        %p297 = pneg %p131
        %p298 = pneg %p164
        %p299 = pneg %p161
        %s300 = sand.u32 %s151, 1
        %s301 = scalar_lea.sflag [#allocation8], %s300
        %s302 = sand.u32 %s151, 1
        %s303 = smul.addr %s302, 8
        %s304 = scalar_lea.vmem [#allocation12], %s303
        %p306 = scmp.eq.s32.totalorder %s32, 0
        // Predicated region
        $region45: #{tpu_custom_call.1} parent=31 // pred_check
          %p307 = pneg %p306
        $region46: #{tpu_custom_call.1} parent=31 // pred_check_branch
          %309 = sbr.rel (%p307) target = $region48
        $region47: #{tpu_custom_call.1} parent=31 // pred_region
          %vm310 = vcmask 7168
          %311 = vst.msk [vmem:[#allocation3] sm:$0xff] %vm310, -1e+30
          %312 = vst.msk [vmem:[#allocation3 + $0x8] sm:$0xff] %vm310, -1e+30
          %313 = vst.msk [vmem:[#allocation4] sm:$0xff] %vm310, 0.0
          %314 = vst.msk [vmem:[#allocation4 + $0x8] sm:$0xff] %vm310, 0.0
          %vm315 = vcmask 261120
          %316 = vst.msk [vmem:[#allocation5] sm:$0xff] %vm315, 0.0
          %317 = vst.msk [vmem:[#allocation5 + $0x8] sm:$0xff] %vm315, 0.0
          %v318 = vld [vmem:[%s254] sm:$0xff]
          %v319 = vmul.f32 %v318, 0.17677669
          %v320 = vpack.c.bf16 %v319, %v319
          %vm321 = vcmask 257024
          %322 = vst.msk [vmem:[#allocation2] sm:$0xf] %vm321, %v320
          %v324 = vunpack.c.l.b16 %v320
          %v325 = vpack.c.b16 %v324, %v324
          %326 = vrot.lane.b32.xlu0 %v325, 96
          %v327 = vpop.permute.xlu0 %326
          %s329 = scalar_lea.vmem [#allocation2], 4
          %330 = vst.msk [vmem:[%s329] sm:$0xf] %vm321, %v327
        $region48: #{tpu_custom_call.1} parent=31 // pred_fallthru
          _
        %v331 = vld [vmem:[%s263] sm:$0xff]
        %v332 = vld [vmem:[%s272] sm:$0xff]
        %v333 = vld [vmem:[#allocation2] sm:$0xf]
        %v334 = vpack.c.bf16 %v331, %v331
        %vm335 = vcmask 261120
        %v337 = vsel %vm335, %v333, 0
        %v340 = vsel %vm335, %v334, 0
        %342 = vmatprep.subr.bf16.mxu0 0
        %343 = vmatpush1.bf16.xpose.msra.mxu0 %v340
        %344 = vmatprep.subr.bf16.mxu0 0
        %345 = vmatpush1.bf16.xpose.msra.mxu0 0
        %346 = vmatprep.subr.bf16.mxu0 0
        %347 = vmatpush1.bf16.xpose.msra.mxu0 0
        %348 = vmatprep.subr.bf16.mxu0 0
        %349 = vmatpush1.bf16.xpose.msra.mxu0 0
        %350 = vmatprep.subr.bf16.mxu0 0
        %351 = vmatpush1.bf16.xpose.msra.mxu0 0
        %352 = vmatprep.subr.bf16.mxu0 0
        %353 = vmatpush1.bf16.xpose.msra.mxu0 0
        %354 = vmatprep.subr.bf16.mxu0 0
        %355 = vmatpush1.bf16.xpose.msra.mxu0 0
        %356 = vmatprep.subr.bf16.mxu0 0
        %357 = vmatpush1.bf16.xpose.msra.mxu0 0
        %358 = vmatprep.subr.bf16.mxu0 0
        %359 = vmatpush1.bf16.xpose.msra.mxu0 0
        %360 = vmatprep.subr.bf16.mxu0 0
        %361 = vmatpush1.bf16.xpose.msra.mxu0 0
        %362 = vmatprep.subr.bf16.mxu0 0
        %363 = vmatpush1.bf16.xpose.msra.mxu0 0
        %364 = vmatprep.subr.bf16.mxu0 0
        %365 = vmatpush1.bf16.xpose.msra.mxu0 0
        %366 = vmatprep.subr.bf16.mxu0 0
        %367 = vmatpush1.bf16.xpose.msra.mxu0 0
        %368 = vmatprep.subr.bf16.mxu0 0
        %369 = vmatpush1.bf16.xpose.msra.mxu0 0
        %370 = vmatprep.subr.bf16.mxu0 0
        %371 = vmatpush1.bf16.xpose.msra.mxu0 0
        %372 = vmatprep.subr.bf16.mxu0 0
        %373 = vmatpush1.bf16.xpose.msra.mxu0 0
        %374 = vmatprep.mubr.bf16.mxu0 0
        %375 = vmatmul.mubr.bf16.gmra.mrb[0].mxu0 %v337
        %v376 = vpop.f32.mrb[0].mxu0
        %v377 = vadd.f32 0.0, %v376
        %v378 = vpop.f32.mrb[0].mxu0
        %v379 = vpop.f32.mrb[0].mxu0
        %v380 = vpop.f32.mrb[0].mxu0
        %381 = vdwg.mxu0
        %v382 = vld [vmem:[#allocation3] sm:$0xff]
        %vm383 = vcmask 64512
        %v384 = vsel %vm383, %v377, -inf
        %385 = vmax.xlane.f32.xlu0 %v384
        %v386 = vpop.xlane.xlu0 %385
        %v387 = vmax.f32 %v382, %v386
        %v388 = vsub.f32 %v382, %v387
        %v389 = vmul.f32 %v388, 1.442695
        %v390 = vpow.pop %v389
        %392 = vset.pattern.permute.xlu0 0
        %393 = vperm.xlu0 %392, %v387
        %v394 = vpop.permute.xlu0 %393
        %v396 = vsub.f32 %v377, %v394
        %v397 = vmul.f32 %v396, 1.442695
        %v398 = vpow.pop %v397
        %v399 = vld [vmem:[#allocation4] sm:$0xff]
        %v400 = vmul.f32 %v390, %v399
        %v401 = vsel %vm383, %v398, 0.0
        %402 = vadd.xlane.f32.xlu0 %v401
        %v403 = vpop.xlane.xlu0 %402
        %v404 = vadd.f32 %v400, %v403
        %vm405 = vcmask 7168
        %406 = vst.msk [vmem:[#allocation4] sm:$0xff] %vm405, %v404
        %v407 = vpack.c.bf16 %v332, %v332
        %v408 = vld [vmem:[#allocation5] sm:$0xff]
        %410 = vset.pattern.permute.xlu0 0
        %411 = vperm.xlu0 %410, %v390
        %v412 = vpop.permute.xlu0 %411
        %v414 = vmul.f32 %v412, %v408
        %v415 = vpack.c.bf16 %v398, %v398
        %v417 = vsel %vm383, %v415, 0
        %vm419 = vcmask 1043456
        %v421 = vsel %vm419, %v407, 0
        %423 = vmatprep.subr.bf16.mxu0 0
        %424 = vmatpush1.bf16.msra.mxu0 %v421
        %425 = vmatprep.subr.bf16.mxu0 0
        %426 = vmatpush1.bf16.msra.mxu0 0
        %427 = vmatprep.subr.bf16.mxu0 0
        %428 = vmatpush1.bf16.msra.mxu0 0
        %429 = vmatprep.subr.bf16.mxu0 0
        %430 = vmatpush1.bf16.msra.mxu0 0
        %431 = vmatprep.subr.bf16.mxu0 0
        %432 = vmatpush1.bf16.msra.mxu0 0
        %433 = vmatprep.subr.bf16.mxu0 0
        %434 = vmatpush1.bf16.msra.mxu0 0
        %435 = vmatprep.subr.bf16.mxu0 0
        %436 = vmatpush1.bf16.msra.mxu0 0
        %437 = vmatprep.subr.bf16.mxu0 0
        %438 = vmatpush1.bf16.msra.mxu0 0
        %439 = vmatprep.subr.bf16.mxu0 0
        %440 = vmatpush1.bf16.msra.mxu0 0
        %441 = vmatprep.subr.bf16.mxu0 0
        %442 = vmatpush1.bf16.msra.mxu0 0
        %443 = vmatprep.subr.bf16.mxu0 0
        %444 = vmatpush1.bf16.msra.mxu0 0
        %445 = vmatprep.subr.bf16.mxu0 0
        %446 = vmatpush1.bf16.msra.mxu0 0
        %447 = vmatprep.subr.bf16.mxu0 0
        %448 = vmatpush1.bf16.msra.mxu0 0
        %449 = vmatprep.subr.bf16.mxu0 0
        %450 = vmatpush1.bf16.msra.mxu0 0
        %451 = vmatprep.subr.bf16.mxu0 0
        %452 = vmatpush1.bf16.msra.mxu0 0
        %453 = vmatprep.subr.bf16.mxu0 0
        %454 = vmatpush1.bf16.msra.mxu0 0
        %455 = vmatprep.mubr.bf16.mxu0 0
        %456 = vmatmul.mubr.bf16.gmra.mrb[0].mxu0 %v417
        %v457 = vpop.f32.mrb[0].mxu0
        %v458 = vadd.f32 0.0, %v457
        %v459 = vpop.f32.mrb[0].mxu0
        %v460 = vpop.f32.mrb[0].mxu0
        %v461 = vpop.f32.mrb[0].mxu0
        %462 = vdwg.mxu0
        %v463 = vadd.f32 %v414, %v458
        %464 = vst.msk [vmem:[#allocation5] sm:$0xff] %vm335, %v463
        %465 = vst.msk [vmem:[#allocation3] sm:$0xff] %vm405, %v387
        %s466 = scalar_lea.vmem [#allocation2], 4
        %v467 = vld [vmem:[%s466] sm:$0xf]
        %469 = vrot.lane.b32.xlu0 %v334, 96
        %v470 = vpop.permute.xlu0 %469
        %v472 = vsel %vm335, %v467, 0
        %v475 = vsel %vm335, %v470, 0
        %477 = vmatprep.subr.bf16.mxu0 0
        %478 = vmatpush1.bf16.xpose.msra.mxu0 %v475
        %479 = vmatprep.subr.bf16.mxu0 0
        %480 = vmatpush1.bf16.xpose.msra.mxu0 0
        %481 = vmatprep.subr.bf16.mxu0 0
        %482 = vmatpush1.bf16.xpose.msra.mxu0 0
        %483 = vmatprep.subr.bf16.mxu0 0
        %484 = vmatpush1.bf16.xpose.msra.mxu0 0
        %485 = vmatprep.subr.bf16.mxu0 0
        %486 = vmatpush1.bf16.xpose.msra.mxu0 0
        %487 = vmatprep.subr.bf16.mxu0 0
        %488 = vmatpush1.bf16.xpose.msra.mxu0 0
        %489 = vmatprep.subr.bf16.mxu0 0
        %490 = vmatpush1.bf16.xpose.msra.mxu0 0
        %491 = vmatprep.subr.bf16.mxu0 0
        %492 = vmatpush1.bf16.xpose.msra.mxu0 0
        %493 = vmatprep.subr.bf16.mxu0 0
        %494 = vmatpush1.bf16.xpose.msra.mxu0 0
        %495 = vmatprep.subr.bf16.mxu0 0
        %496 = vmatpush1.bf16.xpose.msra.mxu0 0
        %497 = vmatprep.subr.bf16.mxu0 0
        %498 = vmatpush1.bf16.xpose.msra.mxu0 0
        %499 = vmatprep.subr.bf16.mxu0 0
        %500 = vmatpush1.bf16.xpose.msra.mxu0 0
        %501 = vmatprep.subr.bf16.mxu0 0
        %502 = vmatpush1.bf16.xpose.msra.mxu0 0
        %503 = vmatprep.subr.bf16.mxu0 0
        %504 = vmatpush1.bf16.xpose.msra.mxu0 0
        %505 = vmatprep.subr.bf16.mxu0 0
        %506 = vmatpush1.bf16.xpose.msra.mxu0 0
        %507 = vmatprep.subr.bf16.mxu0 0
        %508 = vmatpush1.bf16.xpose.msra.mxu0 0
        %509 = vmatprep.mubr.bf16.mxu0 0
        %510 = vmatmul.mubr.bf16.gmra.mrb[0].mxu0 %v472
        %v511 = vpop.f32.mrb[0].mxu0
        %v512 = vadd.f32 0.0, %v511
        %v513 = vpop.f32.mrb[0].mxu0
        %v514 = vpop.f32.mrb[0].mxu0
        %v515 = vpop.f32.mrb[0].mxu0
        %516 = vdwg.mxu0
        %s517 = scalar_lea.vmem [#allocation3], 8
        %v518 = vld [vmem:[%s517] sm:$0xff]
        %v519 = vsel %vm383, %v512, -inf
        %520 = vmax.xlane.f32.xlu0 %v519
        %v521 = vpop.xlane.xlu0 %520
        %v522 = vmax.f32 %v518, %v521
        %v523 = vsub.f32 %v518, %v522
        %v524 = vmul.f32 %v523, 1.442695
        %v525 = vpow.pop %v524
        %527 = vset.pattern.permute.xlu0 0
        %528 = vperm.xlu0 %527, %v522
        %v529 = vpop.permute.xlu0 %528
        %v531 = vsub.f32 %v512, %v529
        %v532 = vmul.f32 %v531, 1.442695
        %v533 = vpow.pop %v532
        %s534 = scalar_lea.vmem [#allocation4], 8
        %v535 = vld [vmem:[%s534] sm:$0xff]
        %v536 = vmul.f32 %v525, %v535
        %v537 = vsel %vm383, %v533, 0.0
        %538 = vadd.xlane.f32.xlu0 %v537
        %v539 = vpop.xlane.xlu0 %538
        %v540 = vadd.f32 %v536, %v539
        %541 = vst.msk [vmem:[%s534] sm:$0xff] %vm405, %v540
        %s542 = scalar_lea.vmem [#allocation5], 8
        %v543 = vld [vmem:[%s542] sm:$0xff]
        %545 = vset.pattern.permute.xlu0 0
        %546 = vperm.xlu0 %545, %v525
        %v547 = vpop.permute.xlu0 %546
        %v549 = vmul.f32 %v547, %v543
        %v550 = vpack.c.bf16 %v533, %v533
        %552 = vrot.lane.b32.xlu0 %v407, 96
        %v553 = vpop.permute.xlu0 %552
        %v555 = vsel %vm383, %v550, 0
        %v558 = vsel %vm419, %v553, 0
        %560 = vmatprep.subr.bf16.mxu0 0
        %561 = vmatpush1.bf16.msra.mxu0 %v558
        %562 = vmatprep.subr.bf16.mxu0 0
        %563 = vmatpush1.bf16.msra.mxu0 0
        %564 = vmatprep.subr.bf16.mxu0 0
        %565 = vmatpush1.bf16.msra.mxu0 0
        %566 = vmatprep.subr.bf16.mxu0 0
        %567 = vmatpush1.bf16.msra.mxu0 0
        %568 = vmatprep.subr.bf16.mxu0 0
        %569 = vmatpush1.bf16.msra.mxu0 0
        %570 = vmatprep.subr.bf16.mxu0 0
        %571 = vmatpush1.bf16.msra.mxu0 0
        %572 = vmatprep.subr.bf16.mxu0 0
        %573 = vmatpush1.bf16.msra.mxu0 0
        %574 = vmatprep.subr.bf16.mxu0 0
        %575 = vmatpush1.bf16.msra.mxu0 0
        %576 = vmatprep.subr.bf16.mxu0 0
        %577 = vmatpush1.bf16.msra.mxu0 0
        %578 = vmatprep.subr.bf16.mxu0 0
        %579 = vmatpush1.bf16.msra.mxu0 0
        %580 = vmatprep.subr.bf16.mxu0 0
        %581 = vmatpush1.bf16.msra.mxu0 0
        %582 = vmatprep.subr.bf16.mxu0 0
        %583 = vmatpush1.bf16.msra.mxu0 0
        %584 = vmatprep.subr.bf16.mxu0 0
        %585 = vmatpush1.bf16.msra.mxu0 0
        %586 = vmatprep.subr.bf16.mxu0 0
        %587 = vmatpush1.bf16.msra.mxu0 0
        %588 = vmatprep.subr.bf16.mxu0 0
        %589 = vmatpush1.bf16.msra.mxu0 0
        %590 = vmatprep.subr.bf16.mxu0 0
        %591 = vmatpush1.bf16.msra.mxu0 0
        %592 = vmatprep.mubr.bf16.mxu0 0
        %593 = vmatmul.mubr.bf16.gmra.mrb[0].mxu0 %v555
        %v594 = vpop.f32.mrb[0].mxu0
        %v595 = vadd.f32 0.0, %v594
        %v596 = vpop.f32.mrb[0].mxu0
        %v597 = vpop.f32.mrb[0].mxu0
        %v598 = vpop.f32.mrb[0].mxu0
        %599 = vdwg.mxu0
        %v600 = vadd.f32 %v549, %v595
        %601 = vst.msk [vmem:[%s542] sm:$0xff] %vm335, %v600
        %602 = vst.msk [vmem:[%s517] sm:$0xff] %vm405, %v522
        // Predicated region
        $region49: #{tpu_custom_call.1} parent=31 // pred_check
          %p603 = pneg %p306
        $region50: #{tpu_custom_call.1} parent=31 // pred_check_branch
          %605 = sbr.rel (%p603) target = $region52
        $region51: #{tpu_custom_call.1} parent=31 // pred_region
          %v606 = vld [vmem:[#allocation4] sm:$0xff]
          %v607 = vrcp.pop %v606
          %v608 = vld [vmem:[#allocation5] sm:$0xff]
          %610 = vset.pattern.permute.xlu0 0
          %611 = vperm.xlu0 %610, %v607
          %v612 = vpop.permute.xlu0 %611
          %v614 = vmul.f32 %v608, %v612
          %615 = vst.msk [vmem:[%s304] sm:$0xff] %vm335, %v614
          %v616 = vld [vmem:[%s534] sm:$0xff]
          %v617 = vrcp.pop %v616
          %v618 = vld [vmem:[%s542] sm:$0xff]
          %620 = vset.pattern.permute.xlu0 0
          %621 = vperm.xlu0 %620, %v617
          %v622 = vpop.permute.xlu0 %621
          %v624 = vmul.f32 %v618, %v622
          %626 = vrot.lane.b32.xlu0 %v624, 32
          %v627 = vpop.permute.xlu0 %626
          %vm629 = vcmask 523520
          %630 = vst.msk [vmem:[%s304] sm:$0xff] %vm629, %v627
        $region52: #{tpu_custom_call.1} parent=31 // pred_fallthru
          _
        %s631 = sand.u32 %s151, 1
        %s632 = scalar_lea.sflag [#allocation8], %s631
        %s633 = sand.u32 %s151, 1
        %s634 = smul.addr %s633, 8
        %s635 = scalar_lea.vmem [#allocation12], %s634
        // Predicated region
        $region53: #{tpu_custom_call.1} parent=31 // pred_check
          %p636 = pneg %p161
        $region54: #{tpu_custom_call.1} parent=31 // pred_check_branch
          %638 = sbr.rel (%p636) target = $region56
        $region55: #{tpu_custom_call.1} parent=31 // pred_region
          %s640 = ssub.s32 128, 128
          %641 = vsyncadd %s632, %s640
          %s642 = sadd.s32 %s30, %s31
          %s643 = sadd.s32 %s642, %s29
          %s644 = smul.addr %s643, 128
          %s645 = scalar_lea.hbm %s3, %s644
          %s647 = sshll.u32 %s635, 4
          %s648 = int_to_ptr.vmem [resolvable:$true] %s647
          %650 = dma.vmem_to_hbm [thread:$0]  %s648, 128, %s645, %s632
        $region56: #{tpu_custom_call.1} parent=31 // pred_fallthru
          _
      $region32: #{tpu_custom_call.1} parent=5 // pred_fallthru
        _
      %p651 = scmp.le.s32.totalorder 2, %s18
      // Predicated region
      $region57: #{tpu_custom_call.1} parent=5 // pred_check
        %p652 = pneg %p651
      $region58: #{tpu_custom_call.1} parent=5 // pred_check_branch
        %654 = sbr.rel (%p652) target = $region60
      $region59: #{tpu_custom_call.1} parent=5 // pred_region
        %s655 = ssub.s32 %s18, 2
        // Predicated region
        $region61: #{tpu_custom_call.1} parent=59 // pred_check
          %p656 = pneg %p167
        $region62: #{tpu_custom_call.1} parent=59 // pred_check_branch
          %658 = sbr.rel (%p656) target = $region64
        $region63: #{tpu_custom_call.1} parent=59 // pred_region
          %s659 = sand.u32 %s152, 1
          %s660 = scalar_lea.sflag [#allocation8], %s659
          %s661 = sand.u32 %s152, 1
          %s662 = smul.addr %s661, 8
          %s663 = scalar_lea.vmem [#allocation12], %s662
          %664 = dma.done %s660, 128
        $region64: #{tpu_custom_call.1} parent=59 // pred_fallthru
          _
      $region60: #{tpu_custom_call.1} parent=5 // pred_fallthru
        _
    $region6: #{tpu_custom_call.1} parent=1 // loop_footer
      %s22 = sadd.s32 1, %s18
    $region7: #{tpu_custom_call.1} parent=1 // loop_footer_branch
      %17 = sbr.rel target = $region3
    $region8: #{tpu_custom_call.1} parent=1 // loop_exit
      _
    %665 = vsyncpa [#allocation7], 1
    %s666 = scalar_lea.sflag [#allocation7], 1
    %667 = vsyncpa %s666, 1
    %668 = vsyncpa [#allocation10], 1
    %s669 = scalar_lea.sflag [#allocation10], 1
    %670 = vsyncpa %s669, 1
    %671 = vsyncpa [#allocation8], 1
    %s672 = scalar_lea.sflag [#allocation8], 1
    %673 = vsyncpa %s672, 1

</llo_original>
